<compile_context>
chip_gen: v6e
topology: v6e:2x2x1
jax: 0.10.0
libtpu: 0.0.40
codegen_flags: <defaults>
</compile_context>

<pallas_src>
import functools

import jax
import jax.numpy as jnp
from jax.experimental import pallas as pl
from jax.experimental.pallas import tpu as pltpu

LN_EPS = 1e-5  # nn.LayerNorm default
WEIGHTS_FINAL_INIT = 0.003
BIAS_FINAL_INIT = 0.0003


def actor_kernel(
    x_ref,
    w1_ref, b1_ref, g1_ref, bb1_ref,
    w2_ref, b2_ref, g2_ref, bb2_ref,
    w3_ref, b3_ref, g3_ref, bb3_ref,
    wo_ref, bo_ref,
    out_ref,
):
    """Whole forward pass for one batch tile, entirely in VMEM.

    Activations are laid out [features, batch_tile] (batch on lanes).
    Three (matmul + LayerNorm + ReLU) stages followed by matmul + tanh.
    Matmuls hit the MXU with f32 accumulation; LayerNorm reductions run over the
    sublane (feature) axis; relu / tanh / normalization are lane-dense VPU/EUP
    work.
    """

    def dense(h, w_ref, b_ref):
        # h: [in, batch]; W: [out, in]; bias: [out, 1] broadcast over batch.
        return (
            jnp.dot(w_ref[...], h.astype(w_ref.dtype),
                    preferred_element_type=jnp.float32)
            + b_ref[...]
        )

    def ln_relu(h, g_ref, b_ref):
        # LayerNorm over the feature axis (axis 0), f32 math, one-pass variance.
        mu = jnp.mean(h, axis=0, keepdims=True)
        var = jnp.mean(h * h, axis=0, keepdims=True) - mu * mu
        inv = jax.lax.rsqrt(var + LN_EPS)
        h = (h - mu) * inv * g_ref[...] + b_ref[...]
        return jnp.maximum(h, 0.0)

    h = dense(x_ref[...], w1_ref, b1_ref)
    h = ln_relu(h, g1_ref, bb1_ref)
    h = dense(h, w2_ref, b2_ref)
    h = ln_relu(h, g2_ref, bb2_ref)
    h = dense(h, w3_ref, b3_ref)
    h = ln_relu(h, g3_ref, bb3_ref)
    a = dense(h, wo_ref, bo_ref)
    out_ref[...] = jnp.tanh(a).astype(out_ref.dtype)


@functools.partial(jax.jit, static_argnames=("batch_tile", "use_bf16"))
def actor_forward(x, params, batch_tile=512, use_bf16=True):
    """x: [B, in_state] float32 -> actions: [B, n_actions] float32."""
    if batch_tile % 128 != 0:
        raise ValueError("batch_tile must be a multiple of 128 (lane width)")

    B, in_state = x.shape
    (w1, b1, g1, bb1, w2, b2, g2, bb2, w3, b3, g3, bb3, wo, bo) = params
    n_actions = wo.shape[0]

    if use_bf16:
        # bf16 matmul operands (v6e/v7x MXU fast path); accumulation stays f32
        # and all LayerNorm / elementwise math stays f32.
        w1, w2, w3, wo = (w.astype(jnp.bfloat16) for w in (w1, w2, w3, wo))

    # Batch-on-lanes: transpose to [in_state, B] and pad the batch to a full
    # tile multiple so every grid step works on a full, lane-dense tile.
    num_tiles = pl.cdiv(B, batch_tile)
    b_pad = num_tiles * batch_tile
    x_t = jnp.pad(x.T, ((0, 0), (0, b_pad - B)))

    def rep(a):
        # Full-array block with a constant index_map: stays resident in VMEM
        # across all grid steps (no per-step re-DMA of the tiny weights).
        nd = a.ndim
        return pl.BlockSpec(a.shape, lambda i, _nd=nd: (0,) * _nd)

    out_t = pl.pallas_call(
        actor_kernel,
        out_shape=jax.ShapeDtypeStruct((n_actions, b_pad), jnp.float32),
        grid_spec=pltpu.PrefetchScalarGridSpec(
            num_scalar_prefetch=0,
            grid=(num_tiles,),
            in_specs=[
                pl.BlockSpec((in_state, batch_tile), lambda i: (0, i)),
                rep(w1), rep(b1), rep(g1), rep(bb1),
                rep(w2), rep(b2), rep(g2), rep(bb2),
                rep(w3), rep(b3), rep(g3), rep(bb3),
                rep(wo), rep(bo),
            ],
            out_specs=pl.BlockSpec((n_actions, batch_tile), lambda i: (0, i)),
        ),
        compiler_params=pltpu.CompilerParams(
            dimension_semantics=("parallel",)),
    )(x_t, w1, b1, g1, bb1, w2, b2, g2, bb2, w3, b3, g3, bb3, wo, bo)

    return out_t[:, :B].T


def init_actor_params(key, in_state, hidden_size, n_actions):
    """Deterministic init mirroring the PyTorch module's init scheme.

    fan_in_uniform_init uses fan_in = tensor.size(-1):
      - Linear weight [out, in]  -> bound 1/sqrt(in)
      - Linear bias   [out]      -> bound 1/sqrt(out)
    Final layer uses +/- WEIGHTS_FINAL_INIT / +/- BIAS_FINAL_INIT.
    LayerNorm: weight = 1, bias = 0.
    Weights are kept in PyTorch [out, in] layout (kernel does W @ h on
    [features, batch] activations); bias / LN params are [features, 1] columns.
    """
    keys = jax.random.split(key, 8)

    def linear(kw, kb, fan_in, fan_out, w_bound=None, b_bound=None):
        wb = (1.0 / jnp.sqrt(fan_in)) if w_bound is None else w_bound
        bb = (1.0 / jnp.sqrt(fan_out)) if b_bound is None else b_bound
        w = jax.random.uniform(kw, (fan_out, fan_in), jnp.float32, -wb, wb)
        b = jax.random.uniform(kb, (fan_out, 1), jnp.float32, -bb, bb)
        return w, b

    h0, h1, h2 = hidden_size
    w1, b1 = linear(keys[0], keys[1], in_state, h0)
    w2, b2 = linear(keys[2], keys[3], h0, h1)
    w3, b3 = linear(keys[4], keys[5], h1, h2)
    wo, bo = linear(keys[6], keys[7], h2, n_actions,
                    w_bound=WEIGHTS_FINAL_INIT, b_bound=BIAS_FINAL_INIT)

    g1, bb1 = jnp.ones((h0, 1), jnp.float32), jnp.zeros((h0, 1), jnp.float32)
    g2, bb2 = jnp.ones((h1, 1), jnp.float32), jnp.zeros((h1, 1), jnp.float32)
    g3, bb3 = jnp.ones((h2, 1), jnp.float32), jnp.zeros((h2, 1), jnp.float32)

    return (w1, b1, g1, bb1, w2, b2, g2, bb2, w3, b3, g3, bb3, wo, bo)


def _layer_norm_ref(h, gamma, beta):
    mu = jnp.mean(h, axis=-1, keepdims=True)
    var = jnp.mean((h - mu) ** 2, axis=-1, keepdims=True)
    return (h - mu) * jax.lax.rsqrt(var + LN_EPS) * gamma + beta


def actor_forward_ref(x, params):
    """Pure-JAX reference of the PyTorch forward, for correctness checking."""
    (w1, b1, g1, bb1, w2, b2, g2, bb2, w3, b3, g3, bb3, wo, bo) = params
    h = x @ w1.T + b1[:, 0]
    h = jax.nn.relu(_layer_norm_ref(h, g1[:, 0], bb1[:, 0]))
    h = h @ w2.T + b2[:, 0]
    h = jax.nn.relu(_layer_norm_ref(h, g2[:, 0], bb2[:, 0]))
    h = h @ w3.T + b3[:, 0]
    h = jax.nn.relu(_layer_norm_ref(h, g3[:, 0], bb3[:, 0]))
    return jnp.tanh(h @ wo.T + bo[:, 0])


if __name__ == "__main__":
    key = jax.random.PRNGKey(0)
    k_param, k_x1, k_x2 = jax.random.split(key, 3)

    in_state = 16
    hidden_size = (32, 64, 32)
    n_actions = 8

    params = init_actor_params(k_param, in_state, hidden_size, n_actions)

    # Small batch, full-precision matmuls: tight check against the reference.
    x_small = jax.random.normal(k_x1, (8, in_state), jnp.float32)
    out_f32 = jax.block_until_ready(
        actor_forward(x_small, params, batch_tile=128, use_bf16=False))
    ref_small = actor_forward_ref(x_small, params)
    assert out_f32.shape == (8, n_actions)
    assert jnp.allclose(out_f32, ref_small, atol=1e-4, rtol=1e-4)

    # Non-divisible batch with bf16 matmul operands: exercises the padding path
    # and a multi-tile "parallel" grid (>=2 steps -> both TCs on v7x).
    x_big = jax.random.normal(k_x2, (300, in_state), jnp.float32)
    out_bf16 = jax.block_until_ready(
        actor_forward(x_big, params, batch_tile=128, use_bf16=True))
    ref_big = actor_forward_ref(x_big, params)
    assert out_bf16.shape == (300, n_actions)
    assert jnp.allclose(out_bf16, ref_big, atol=5e-2, rtol=5e-2)

    print("KERNEL_OK")
</pallas_src>

<mosaic_0001>
module attributes {stable_mosaic.version = 11 : i64} {
  func.func @actor_kernel(%arg0: i32, %arg1: memref<16x128xf32, #tpu.memory_space<vmem>>, %arg2: memref<32x16xf32, #tpu.memory_space<vmem>>, %arg3: memref<32x1xf32, #tpu.memory_space<vmem>>, %arg4: memref<32x1xf32, #tpu.memory_space<vmem>>, %arg5: memref<32x1xf32, #tpu.memory_space<vmem>>, %arg6: memref<64x32xf32, #tpu.memory_space<vmem>>, %arg7: memref<64x1xf32, #tpu.memory_space<vmem>>, %arg8: memref<64x1xf32, #tpu.memory_space<vmem>>, %arg9: memref<64x1xf32, #tpu.memory_space<vmem>>, %arg10: memref<32x64xf32, #tpu.memory_space<vmem>>, %arg11: memref<32x1xf32, #tpu.memory_space<vmem>>, %arg12: memref<32x1xf32, #tpu.memory_space<vmem>>, %arg13: memref<32x1xf32, #tpu.memory_space<vmem>>, %arg14: memref<8x32xf32, #tpu.memory_space<vmem>>, %arg15: memref<8x1xf32, #tpu.memory_space<vmem>>, %arg16: memref<8x128xf32, #tpu.memory_space<vmem>>) attributes {dimension_semantics = [#tpu.dimension_semantics<parallel>], iteration_bounds = array<i64: 1>, scalar_prefetch = 0 : i64, scratch_operands = 0 : i64, tpu.core_type = #tpu.core_type<tc>, window_params = [{transform_indices = @transform_0, window_bounds = array<i64: 16, 128>}, {pipeline_mode = #tpu.pipeline_mode<synchronous>, transform_indices = @transform_1, window_bounds = array<i64: 32, 16>}, {pipeline_mode = #tpu.pipeline_mode<synchronous>, transform_indices = @transform_2, window_bounds = array<i64: 32, 1>}, {pipeline_mode = #tpu.pipeline_mode<synchronous>, transform_indices = @transform_3, window_bounds = array<i64: 32, 1>}, {pipeline_mode = #tpu.pipeline_mode<synchronous>, transform_indices = @transform_4, window_bounds = array<i64: 32, 1>}, {pipeline_mode = #tpu.pipeline_mode<synchronous>, transform_indices = @transform_5, window_bounds = array<i64: 64, 32>}, {pipeline_mode = #tpu.pipeline_mode<synchronous>, transform_indices = @transform_6, window_bounds = array<i64: 64, 1>}, {pipeline_mode = #tpu.pipeline_mode<synchronous>, transform_indices = @transform_7, window_bounds = array<i64: 64, 1>}, {pipeline_mode = #tpu.pipeline_mode<synchronous>, transform_indices = @transform_8, window_bounds = array<i64: 64, 1>}, {pipeline_mode = #tpu.pipeline_mode<synchronous>, transform_indices = @transform_9, window_bounds = array<i64: 32, 64>}, {pipeline_mode = #tpu.pipeline_mode<synchronous>, transform_indices = @transform_10, window_bounds = array<i64: 32, 1>}, {pipeline_mode = #tpu.pipeline_mode<synchronous>, transform_indices = @transform_11, window_bounds = array<i64: 32, 1>}, {pipeline_mode = #tpu.pipeline_mode<synchronous>, transform_indices = @transform_12, window_bounds = array<i64: 32, 1>}, {pipeline_mode = #tpu.pipeline_mode<synchronous>, transform_indices = @transform_13, window_bounds = array<i64: 8, 32>}, {pipeline_mode = #tpu.pipeline_mode<synchronous>, transform_indices = @transform_14, window_bounds = array<i64: 8, 1>}, {transform_indices = @transform_15, window_bounds = array<i64: 8, 128>}]} {
    %c0 = arith.constant 0 : index
    %c0_0 = arith.constant 0 : index
    %0 = vector.load %arg1[%c0, %c0_0] : memref<16x128xf32, #tpu.memory_space<vmem>>, vector<16x128xf32>
    %c0_1 = arith.constant 0 : index
    %c0_2 = arith.constant 0 : index
    %1 = vector.load %arg2[%c0_1, %c0_2] : memref<32x16xf32, #tpu.memory_space<vmem>>, vector<32x16xf32>
    %cst = arith.constant dense<0.000000e+00> : vector<32x128xf32>
    %2 = tpu.matmul %1, %0, %cst {dimension_numbers = #tpu.dot_dimension_numbers<[1], [0], [0], [1], [0, 0, 1, 1], [], []>} : vector<32x16xf32>, vector<16x128xf32>, vector<32x128xf32> -> vector<32x128xf32>
    %c0_3 = arith.constant 0 : index
    %c0_4 = arith.constant 0 : index
    %3 = vector.load %arg3[%c0_3, %c0_4] : memref<32x1xf32, #tpu.memory_space<vmem>>, vector<32x1xf32>
    %4 = vector.broadcast %3 : vector<32x1xf32> to vector<32x128xf32>
    %5 = arith.addf %2, %4 : vector<32x128xf32>
    %cst_5 = arith.constant dense<0.000000e+00> : vector<128xf32>
    %6 = vector.multi_reduction <add>, %5, %cst_5 [0] : vector<32x128xf32> to vector<128xf32>
    %7 = vector.shape_cast %6 : vector<128xf32> to vector<1x128xf32>
    %cst_6 = arith.constant 3.200000e+01 : f32
    %8 = vector.broadcast %cst_6 : f32 to vector<1x128xf32>
    %9 = arith.divf %7, %8 : vector<1x128xf32>
    %10 = arith.mulf %5, %5 : vector<32x128xf32>
    %cst_7 = arith.constant dense<0.000000e+00> : vector<128xf32>
    %11 = vector.multi_reduction <add>, %10, %cst_7 [0] : vector<32x128xf32> to vector<128xf32>
    %12 = vector.shape_cast %11 : vector<128xf32> to vector<1x128xf32>
    %cst_8 = arith.constant 3.200000e+01 : f32
    %13 = vector.broadcast %cst_8 : f32 to vector<1x128xf32>
    %14 = arith.divf %12, %13 : vector<1x128xf32>
    %15 = arith.mulf %9, %9 : vector<1x128xf32>
    %16 = arith.subf %14, %15 : vector<1x128xf32>
    %cst_9 = arith.constant 9.99999974E-6 : f32
    %17 = vector.broadcast %cst_9 : f32 to vector<1x128xf32>
    %18 = arith.addf %16, %17 : vector<1x128xf32>
    %19 = math.rsqrt %18 : vector<1x128xf32>
    %20 = vector.broadcast %9 : vector<1x128xf32> to vector<32x128xf32>
    %21 = arith.subf %5, %20 : vector<32x128xf32>
    %22 = vector.broadcast %19 : vector<1x128xf32> to vector<32x128xf32>
    %23 = arith.mulf %21, %22 : vector<32x128xf32>
    %c0_10 = arith.constant 0 : index
    %c0_11 = arith.constant 0 : index
    %24 = vector.load %arg4[%c0_10, %c0_11] : memref<32x1xf32, #tpu.memory_space<vmem>>, vector<32x1xf32>
    %25 = vector.broadcast %24 : vector<32x1xf32> to vector<32x128xf32>
    %26 = arith.mulf %23, %25 : vector<32x128xf32>
    %c0_12 = arith.constant 0 : index
    %c0_13 = arith.constant 0 : index
    %27 = vector.load %arg5[%c0_12, %c0_13] : memref<32x1xf32, #tpu.memory_space<vmem>>, vector<32x1xf32>
    %28 = vector.broadcast %27 : vector<32x1xf32> to vector<32x128xf32>
    %29 = arith.addf %26, %28 : vector<32x128xf32>
    %cst_14 = arith.constant 0.000000e+00 : f32
    %30 = vector.broadcast %cst_14 : f32 to vector<32x128xf32>
    %31 = arith.maximumf %29, %30 : vector<32x128xf32>
    %c0_15 = arith.constant 0 : index
    %c0_16 = arith.constant 0 : index
    %32 = vector.load %arg6[%c0_15, %c0_16] : memref<64x32xf32, #tpu.memory_space<vmem>>, vector<64x32xf32>
    %cst_17 = arith.constant dense<0.000000e+00> : vector<64x128xf32>
    %33 = tpu.matmul %32, %31, %cst_17 {dimension_numbers = #tpu.dot_dimension_numbers<[1], [0], [0], [1], [0, 0, 1, 1], [], []>} : vector<64x32xf32>, vector<32x128xf32>, vector<64x128xf32> -> vector<64x128xf32>
    %c0_18 = arith.constant 0 : index
    %c0_19 = arith.constant 0 : index
    %34 = vector.load %arg7[%c0_18, %c0_19] : memref<64x1xf32, #tpu.memory_space<vmem>>, vector<64x1xf32>
    %35 = vector.broadcast %34 : vector<64x1xf32> to vector<64x128xf32>
    %36 = arith.addf %33, %35 : vector<64x128xf32>
    %cst_20 = arith.constant dense<0.000000e+00> : vector<128xf32>
    %37 = vector.multi_reduction <add>, %36, %cst_20 [0] : vector<64x128xf32> to vector<128xf32>
    %38 = vector.shape_cast %37 : vector<128xf32> to vector<1x128xf32>
    %cst_21 = arith.constant 6.400000e+01 : f32
    %39 = vector.broadcast %cst_21 : f32 to vector<1x128xf32>
    %40 = arith.divf %38, %39 : vector<1x128xf32>
    %41 = arith.mulf %36, %36 : vector<64x128xf32>
    %cst_22 = arith.constant dense<0.000000e+00> : vector<128xf32>
    %42 = vector.multi_reduction <add>, %41, %cst_22 [0] : vector<64x128xf32> to vector<128xf32>
    %43 = vector.shape_cast %42 : vector<128xf32> to vector<1x128xf32>
    %cst_23 = arith.constant 6.400000e+01 : f32
    %44 = vector.broadcast %cst_23 : f32 to vector<1x128xf32>
    %45 = arith.divf %43, %44 : vector<1x128xf32>
    %46 = arith.mulf %40, %40 : vector<1x128xf32>
    %47 = arith.subf %45, %46 : vector<1x128xf32>
    %cst_24 = arith.constant 9.99999974E-6 : f32
    %48 = vector.broadcast %cst_24 : f32 to vector<1x128xf32>
    %49 = arith.addf %47, %48 : vector<1x128xf32>
    %50 = math.rsqrt %49 : vector<1x128xf32>
    %51 = vector.broadcast %40 : vector<1x128xf32> to vector<64x128xf32>
    %52 = arith.subf %36, %51 : vector<64x128xf32>
    %53 = vector.broadcast %50 : vector<1x128xf32> to vector<64x128xf32>
    %54 = arith.mulf %52, %53 : vector<64x128xf32>
    %c0_25 = arith.constant 0 : index
    %c0_26 = arith.constant 0 : index
    %55 = vector.load %arg8[%c0_25, %c0_26] : memref<64x1xf32, #tpu.memory_space<vmem>>, vector<64x1xf32>
    %56 = vector.broadcast %55 : vector<64x1xf32> to vector<64x128xf32>
    %57 = arith.mulf %54, %56 : vector<64x128xf32>
    %c0_27 = arith.constant 0 : index
    %c0_28 = arith.constant 0 : index
    %58 = vector.load %arg9[%c0_27, %c0_28] : memref<64x1xf32, #tpu.memory_space<vmem>>, vector<64x1xf32>
    %59 = vector.broadcast %58 : vector<64x1xf32> to vector<64x128xf32>
    %60 = arith.addf %57, %59 : vector<64x128xf32>
    %cst_29 = arith.constant 0.000000e+00 : f32
    %61 = vector.broadcast %cst_29 : f32 to vector<64x128xf32>
    %62 = arith.maximumf %60, %61 : vector<64x128xf32>
    %c0_30 = arith.constant 0 : index
    %c0_31 = arith.constant 0 : index
    %63 = vector.load %arg10[%c0_30, %c0_31] : memref<32x64xf32, #tpu.memory_space<vmem>>, vector<32x64xf32>
    %cst_32 = arith.constant dense<0.000000e+00> : vector<32x128xf32>
    %64 = tpu.matmul %63, %62, %cst_32 {dimension_numbers = #tpu.dot_dimension_numbers<[1], [0], [0], [1], [0, 0, 1, 1], [], []>} : vector<32x64xf32>, vector<64x128xf32>, vector<32x128xf32> -> vector<32x128xf32>
    %c0_33 = arith.constant 0 : index
    %c0_34 = arith.constant 0 : index
    %65 = vector.load %arg11[%c0_33, %c0_34] : memref<32x1xf32, #tpu.memory_space<vmem>>, vector<32x1xf32>
    %66 = vector.broadcast %65 : vector<32x1xf32> to vector<32x128xf32>
    %67 = arith.addf %64, %66 : vector<32x128xf32>
    %cst_35 = arith.constant dense<0.000000e+00> : vector<128xf32>
    %68 = vector.multi_reduction <add>, %67, %cst_35 [0] : vector<32x128xf32> to vector<128xf32>
    %69 = vector.shape_cast %68 : vector<128xf32> to vector<1x128xf32>
    %cst_36 = arith.constant 3.200000e+01 : f32
    %70 = vector.broadcast %cst_36 : f32 to vector<1x128xf32>
    %71 = arith.divf %69, %70 : vector<1x128xf32>
    %72 = arith.mulf %67, %67 : vector<32x128xf32>
    %cst_37 = arith.constant dense<0.000000e+00> : vector<128xf32>
    %73 = vector.multi_reduction <add>, %72, %cst_37 [0] : vector<32x128xf32> to vector<128xf32>
    %74 = vector.shape_cast %73 : vector<128xf32> to vector<1x128xf32>
    %cst_38 = arith.constant 3.200000e+01 : f32
    %75 = vector.broadcast %cst_38 : f32 to vector<1x128xf32>
    %76 = arith.divf %74, %75 : vector<1x128xf32>
    %77 = arith.mulf %71, %71 : vector<1x128xf32>
    %78 = arith.subf %76, %77 : vector<1x128xf32>
    %cst_39 = arith.constant 9.99999974E-6 : f32
    %79 = vector.broadcast %cst_39 : f32 to vector<1x128xf32>
    %80 = arith.addf %78, %79 : vector<1x128xf32>
    %81 = math.rsqrt %80 : vector<1x128xf32>
    %82 = vector.broadcast %71 : vector<1x128xf32> to vector<32x128xf32>
    %83 = arith.subf %67, %82 : vector<32x128xf32>
    %84 = vector.broadcast %81 : vector<1x128xf32> to vector<32x128xf32>
    %85 = arith.mulf %83, %84 : vector<32x128xf32>
    %c0_40 = arith.constant 0 : index
    %c0_41 = arith.constant 0 : index
    %86 = vector.load %arg12[%c0_40, %c0_41] : memref<32x1xf32, #tpu.memory_space<vmem>>, vector<32x1xf32>
    %87 = vector.broadcast %86 : vector<32x1xf32> to vector<32x128xf32>
    %88 = arith.mulf %85, %87 : vector<32x128xf32>
    %c0_42 = arith.constant 0 : index
    %c0_43 = arith.constant 0 : index
    %89 = vector.load %arg13[%c0_42, %c0_43] : memref<32x1xf32, #tpu.memory_space<vmem>>, vector<32x1xf32>
    %90 = vector.broadcast %89 : vector<32x1xf32> to vector<32x128xf32>
    %91 = arith.addf %88, %90 : vector<32x128xf32>
    %cst_44 = arith.constant 0.000000e+00 : f32
    %92 = vector.broadcast %cst_44 : f32 to vector<32x128xf32>
    %93 = arith.maximumf %91, %92 : vector<32x128xf32>
    %c0_45 = arith.constant 0 : index
    %c0_46 = arith.constant 0 : index
    %94 = vector.load %arg14[%c0_45, %c0_46] : memref<8x32xf32, #tpu.memory_space<vmem>>, vector<8x32xf32>
    %cst_47 = arith.constant dense<0.000000e+00> : vector<8x128xf32>
    %95 = tpu.matmul %94, %93, %cst_47 {dimension_numbers = #tpu.dot_dimension_numbers<[1], [0], [0], [1], [0, 0, 1, 1], [], []>} : vector<8x32xf32>, vector<32x128xf32>, vector<8x128xf32> -> vector<8x128xf32>
    %c0_48 = arith.constant 0 : index
    %c0_49 = arith.constant 0 : index
    %96 = vector.load %arg15[%c0_48, %c0_49] : memref<8x1xf32, #tpu.memory_space<vmem>>, vector<8x1xf32>
    %97 = vector.broadcast %96 : vector<8x1xf32> to vector<8x128xf32>
    %98 = arith.addf %95, %97 : vector<8x128xf32>
    %99 = math.tanh %98 : vector<8x128xf32>
    %c0_50 = arith.constant 0 : index
    %c0_51 = arith.constant 0 : index
    %100 = vector.load %arg16[%c0_50, %c0_51] : memref<8x128xf32, #tpu.memory_space<vmem>>, vector<8x128xf32>
    tpu.vector_store %arg16[%c0_50, %c0_51], %99 {strides = array<i32>} : memref<8x128xf32, #tpu.memory_space<vmem>>, vector<8x128xf32>,
    return
  }
  func.func @transform_0(%arg0: i32) -> (i32, i32) {
    %c0_i32 = arith.constant 0 : i32
    %c0_i32_0 = arith.constant 0 : i32
    return %c0_i32, %arg0 : i32, i32
  }
  func.func @transform_1(%arg0: i32) -> (i32, i32) {
    %c0_i32 = arith.constant 0 : i32
    %c0_i32_0 = arith.constant 0 : i32
    %c0_i32_1 = arith.constant 0 : i32
    return %c0_i32, %c0_i32_0 : i32, i32
  }
  func.func @transform_2(%arg0: i32) -> (i32, i32) {
    %c0_i32 = arith.constant 0 : i32
    %c0_i32_0 = arith.constant 0 : i32
    %c0_i32_1 = arith.constant 0 : i32
    return %c0_i32, %c0_i32_0 : i32, i32
  }
  func.func @transform_3(%arg0: i32) -> (i32, i32) {
    %c0_i32 = arith.constant 0 : i32
    %c0_i32_0 = arith.constant 0 : i32
    %c0_i32_1 = arith.constant 0 : i32
    return %c0_i32, %c0_i32_0 : i32, i32
  }
  func.func @transform_4(%arg0: i32) -> (i32, i32) {
    %c0_i32 = arith.constant 0 : i32
    %c0_i32_0 = arith.constant 0 : i32
    %c0_i32_1 = arith.constant 0 : i32
    return %c0_i32, %c0_i32_0 : i32, i32
  }
  func.func @transform_5(%arg0: i32) -> (i32, i32) {
    %c0_i32 = arith.constant 0 : i32
    %c0_i32_0 = arith.constant 0 : i32
    %c0_i32_1 = arith.constant 0 : i32
    return %c0_i32, %c0_i32_0 : i32, i32
  }
  func.func @transform_6(%arg0: i32) -> (i32, i32) {
    %c0_i32 = arith.constant 0 : i32
    %c0_i32_0 = arith.constant 0 : i32
    %c0_i32_1 = arith.constant 0 : i32
    return %c0_i32, %c0_i32_0 : i32, i32
  }
  func.func @transform_7(%arg0: i32) -> (i32, i32) {
    %c0_i32 = arith.constant 0 : i32
    %c0_i32_0 = arith.constant 0 : i32
    %c0_i32_1 = arith.constant 0 : i32
    return %c0_i32, %c0_i32_0 : i32, i32
  }
  func.func @transform_8(%arg0: i32) -> (i32, i32) {
    %c0_i32 = arith.constant 0 : i32
    %c0_i32_0 = arith.constant 0 : i32
    %c0_i32_1 = arith.constant 0 : i32
    return %c0_i32, %c0_i32_0 : i32, i32
  }
  func.func @transform_9(%arg0: i32) -> (i32, i32) {
    %c0_i32 = arith.constant 0 : i32
    %c0_i32_0 = arith.constant 0 : i32
    %c0_i32_1 = arith.constant 0 : i32
    return %c0_i32, %c0_i32_0 : i32, i32
  }
  func.func @transform_10(%arg0: i32) -> (i32, i32) {
    %c0_i32 = arith.constant 0 : i32
    %c0_i32_0 = arith.constant 0 : i32
    %c0_i32_1 = arith.constant 0 : i32
    return %c0_i32, %c0_i32_0 : i32, i32
  }
  func.func @transform_11(%arg0: i32) -> (i32, i32) {
    %c0_i32 = arith.constant 0 : i32
    %c0_i32_0 = arith.constant 0 : i32
    %c0_i32_1 = arith.constant 0 : i32
    return %c0_i32, %c0_i32_0 : i32, i32
  }
  func.func @transform_12(%arg0: i32) -> (i32, i32) {
    %c0_i32 = arith.constant 0 : i32
    %c0_i32_0 = arith.constant 0 : i32
    %c0_i32_1 = arith.constant 0 : i32
    return %c0_i32, %c0_i32_0 : i32, i32
  }
  func.func @transform_13(%arg0: i32) -> (i32, i32) {
    %c0_i32 = arith.constant 0 : i32
    %c0_i32_0 = arith.constant 0 : i32
    %c0_i32_1 = arith.constant 0 : i32
    return %c0_i32, %c0_i32_0 : i32, i32
  }
  func.func @transform_14(%arg0: i32) -> (i32, i32) {
    %c0_i32 = arith.constant 0 : i32
    %c0_i32_0 = arith.constant 0 : i32
    %c0_i32_1 = arith.constant 0 : i32
    return %c0_i32, %c0_i32_0 : i32, i32
  }
  func.func @transform_15(%arg0: i32) -> (i32, i32) {
    %c0_i32 = arith.constant 0 : i32
    %c0_i32_0 = arith.constant 0 : i32
    return %c0_i32, %arg0 : i32, i32
  }
}

</mosaic_0001>

<llo_original>
// kernel: actor_forward.1
$region0: #{actor_forward.1}
  #allocation0 [shape = 'u32[]', space=smem, size = 0x4, offset = 0x4, fixed_abs, tag = 'smem constant byte address 0x4 - core index']
  #allocation1 [shape = 'u32[144,128]{1,0:T(1,128)}', space=vmem, size = 0x12000, scoped, tag = 'internal scratch']
  %s0 = inlined_call_operand.vmem [shape: f32[16,128], index: 0, kind: input, shape index: {}]
  %s1 = inlined_call_operand.vmem [shape: f32[32,16], index: 1, kind: input, shape index: {}]
  %s2 = inlined_call_operand.vmem [shape: f32[32,1], index: 2, kind: input, shape index: {}]
  %s3 = inlined_call_operand.vmem [shape: f32[32,1], index: 3, kind: input, shape index: {}]
  %s4 = inlined_call_operand.vmem [shape: f32[32,1], index: 4, kind: input, shape index: {}]
  %s5 = inlined_call_operand.vmem [shape: f32[64,32], index: 5, kind: input, shape index: {}]
  %s6 = inlined_call_operand.vmem [shape: f32[64,1], index: 6, kind: input, shape index: {}]
  %s7 = inlined_call_operand.vmem [shape: f32[64,1], index: 7, kind: input, shape index: {}]
  %s8 = inlined_call_operand.vmem [shape: f32[64,1], index: 8, kind: input, shape index: {}]
  %s9 = inlined_call_operand.vmem [shape: f32[32,64], index: 9, kind: input, shape index: {}]
  %s10 = inlined_call_operand.vmem [shape: f32[32,1], index: 10, kind: input, shape index: {}]
  %s11 = inlined_call_operand.vmem [shape: f32[32,1], index: 11, kind: input, shape index: {}]
  %s12 = inlined_call_operand.vmem [shape: f32[32,1], index: 12, kind: input, shape index: {}]
  %s13 = inlined_call_operand.vmem [shape: f32[8,32], index: 13, kind: input, shape index: {}]
  %s14 = inlined_call_operand.vmem [shape: f32[8,1], index: 14, kind: input, shape index: {}]
  %s15 = inlined_call_operand.vmem [shape: f32[8,128], index: 15, kind: output, shape index: {}]
  %s16 = sld [smem:[#allocation0]]
  $region70: #{actor_forward.1} parent=0
    _
  %s18 = ssub.s32 1, %s16
  %s19 = scalar_select 0, %s18, %s16
  // Predicated region
  $region2: #{actor_forward.1} parent=0 // pred_check
    _
  $region3: #{actor_forward.1} parent=0 // pred_check_branch
    %21 = sbr.rel (0) target = $region5
  $region4: #{actor_forward.1} parent=0 // pred_region
    _
  $region5: #{actor_forward.1} parent=0 // pred_fallthru
    _
  // Predicated region
  $region6: #{actor_forward.1} parent=0 // pred_check
    _
  $region7: #{actor_forward.1} parent=0 // pred_check_branch
    %23 = sbr.rel (0) target = $region9
  $region8: #{actor_forward.1} parent=0 // pred_region
    _
  $region9: #{actor_forward.1} parent=0 // pred_fallthru
    _
  // Predicated region
  $region10: #{actor_forward.1} parent=0 // pred_check
    _
  $region11: #{actor_forward.1} parent=0 // pred_check_branch
    %25 = sbr.rel (0) target = $region13
  $region12: #{actor_forward.1} parent=0 // pred_region
    _
  $region13: #{actor_forward.1} parent=0 // pred_fallthru
    _
  // Predicated region
  $region14: #{actor_forward.1} parent=0 // pred_check
    _
  $region15: #{actor_forward.1} parent=0 // pred_check_branch
    %27 = sbr.rel (0) target = $region17
  $region16: #{actor_forward.1} parent=0 // pred_region
    _
  $region17: #{actor_forward.1} parent=0 // pred_fallthru
    _
  // Predicated region
  $region18: #{actor_forward.1} parent=0 // pred_check
    _
  $region19: #{actor_forward.1} parent=0 // pred_check_branch
    %29 = sbr.rel (0) target = $region21
  $region20: #{actor_forward.1} parent=0 // pred_region
    _
  $region21: #{actor_forward.1} parent=0 // pred_fallthru
    _
  // Predicated region
  $region22: #{actor_forward.1} parent=0 // pred_check
    _
  $region23: #{actor_forward.1} parent=0 // pred_check_branch
    %31 = sbr.rel (0) target = $region25
  $region24: #{actor_forward.1} parent=0 // pred_region
    _
  $region25: #{actor_forward.1} parent=0 // pred_fallthru
    _
  // Predicated region
  $region26: #{actor_forward.1} parent=0 // pred_check
    _
  $region27: #{actor_forward.1} parent=0 // pred_check_branch
    %33 = sbr.rel (0) target = $region29
  $region28: #{actor_forward.1} parent=0 // pred_region
    _
  $region29: #{actor_forward.1} parent=0 // pred_fallthru
    _
  // Predicated region
  $region30: #{actor_forward.1} parent=0 // pred_check
    _
  $region31: #{actor_forward.1} parent=0 // pred_check_branch
    %35 = sbr.rel (0) target = $region33
  $region32: #{actor_forward.1} parent=0 // pred_region
    _
  $region33: #{actor_forward.1} parent=0 // pred_fallthru
    _
  // Predicated region
  $region34: #{actor_forward.1} parent=0 // pred_check
    _
  $region35: #{actor_forward.1} parent=0 // pred_check_branch
    %37 = sbr.rel (0) target = $region37
  $region36: #{actor_forward.1} parent=0 // pred_region
    _
  $region37: #{actor_forward.1} parent=0 // pred_fallthru
    _
  // Predicated region
  $region38: #{actor_forward.1} parent=0 // pred_check
    _
  $region39: #{actor_forward.1} parent=0 // pred_check_branch
    %39 = sbr.rel (0) target = $region41
  $region40: #{actor_forward.1} parent=0 // pred_region
    _
  $region41: #{actor_forward.1} parent=0 // pred_fallthru
    _
  // Predicated region
  $region42: #{actor_forward.1} parent=0 // pred_check
    _
  $region43: #{actor_forward.1} parent=0 // pred_check_branch
    %41 = sbr.rel (0) target = $region45
  $region44: #{actor_forward.1} parent=0 // pred_region
    _
  $region45: #{actor_forward.1} parent=0 // pred_fallthru
    _
  // Predicated region
  $region46: #{actor_forward.1} parent=0 // pred_check
    _
  $region47: #{actor_forward.1} parent=0 // pred_check_branch
    %43 = sbr.rel (0) target = $region49
  $region48: #{actor_forward.1} parent=0 // pred_region
    _
  $region49: #{actor_forward.1} parent=0 // pred_fallthru
    _
  // Predicated region
  $region50: #{actor_forward.1} parent=0 // pred_check
    _
  $region51: #{actor_forward.1} parent=0 // pred_check_branch
    %45 = sbr.rel (0) target = $region53
  $region52: #{actor_forward.1} parent=0 // pred_region
    _
  $region53: #{actor_forward.1} parent=0 // pred_fallthru
    _
  // Predicated region
  $region54: #{actor_forward.1} parent=0 // pred_check
    _
  $region55: #{actor_forward.1} parent=0 // pred_check_branch
    %47 = sbr.rel (0) target = $region57
  $region56: #{actor_forward.1} parent=0 // pred_region
    _
  $region57: #{actor_forward.1} parent=0 // pred_fallthru
    _
  // Predicated region
  $region58: #{actor_forward.1} parent=0 // pred_check
    _
  $region59: #{actor_forward.1} parent=0 // pred_check_branch
    %49 = sbr.rel (0) target = $region61
  $region60: #{actor_forward.1} parent=0 // pred_region
    _
  $region61: #{actor_forward.1} parent=0 // pred_fallthru
    _
  %v50 = vld [vmem:[%s0] sm:$0xff]
  %v51 = vld [vmem:[%s0 + $0x8] sm:$0xff]
  %v52 = vld [vmem:[%s1] sm:$0xff]
  %v53 = vld [vmem:[%s1 + $0x8] sm:$0xff]
  %v54 = vld [vmem:[%s1 + $0x10] sm:$0xff]
  %v55 = vld [vmem:[%s1 + $0x18] sm:$0xff]
  %v56 = vld [vmem:[%s2] sm:$0xff]
  %v57 = vld [vmem:[%s2 + $0x8] sm:$0xff]
  %v58 = vld [vmem:[%s2 + $0x10] sm:$0xff]
  %v59 = vld [vmem:[%s2 + $0x18] sm:$0xff]
  %61 = vset.pattern.permute.xlu0 0
  %62 = vperm.xlu0 %61, %v56
  %v63 = vpop.permute.xlu0 %62
  %66 = vset.pattern.permute.xlu0 0
  %67 = vperm.xlu0 %66, %v57
  %v68 = vpop.permute.xlu0 %67
  %71 = vset.pattern.permute.xlu0 0
  %72 = vperm.xlu0 %71, %v58
  %v73 = vpop.permute.xlu0 %72
  %76 = vset.pattern.permute.xlu0 0
  %77 = vperm.xlu0 %76, %v59
  %v78 = vpop.permute.xlu0 %77
  %vm80 = vcmask 130048
  %v82 = vsel %vm80, %v52, 0
  %v85 = vsel %vm80, %v53, 0
  %v88 = vsel %vm80, %v54, 0
  %v91 = vsel %vm80, %v55, 0
  %93 = vmatprep.subr.mxu0 0.0
  %94 = vmatpush1.msra.mxu0 0.0
  %95 = vmatprep.subr.mxu0 0.0
  %96 = vmatpush1.msra.mxu0 0.0
  %97 = vmatprep.subr.mxu0 0.0
  %98 = vmatpush1.msra.mxu0 0.0
  %99 = vmatprep.subr.mxu0 0.0
  %100 = vmatpush1.msra.mxu0 0.0
  %101 = vmatprep.subr.mxu0 0.0
  %102 = vmatpush1.msra.mxu0 0.0
  %103 = vmatprep.subr.mxu0 0.0
  %104 = vmatpush1.msra.mxu0 0.0
  %105 = vmatprep.subr.mxu0 0.0
  %106 = vmatpush1.msra.mxu0 0.0
  %107 = vmatprep.subr.mxu0 0.0
  %108 = vmatpush1.msra.mxu0 0.0
  %109 = vmatprep.subr.mxu0 0.0
  %110 = vmatpush1.msra.mxu0 0.0
  %111 = vmatprep.subr.mxu0 0.0
  %112 = vmatpush1.msra.mxu0 0.0
  %113 = vmatprep.subr.mxu0 0.0
  %114 = vmatpush1.msra.mxu0 0.0
  %115 = vmatprep.subr.mxu0 0.0
  %116 = vmatpush1.msra.mxu0 0.0
  %117 = vmatprep.subr.mxu0 0.0
  %118 = vmatpush1.msra.mxu0 0.0
  %119 = vmatprep.subr.mxu0 0.0
  %120 = vmatpush1.msra.mxu0 0.0
  %121 = vmatprep.subr.mxu0 0.0
  %122 = vmatpush1.msra.mxu0 %v51
  %123 = vmatprep.subr.mxu0 0.0
  %124 = vmatpush1.msra.mxu0 %v50
  %125 = vmatprep.subr.mxu0 0.0
  %126 = vmatpush2.msra.mxu0 0.0
  %127 = vmatprep.subr.mxu0 0.0
  %128 = vmatpush2.msra.mxu0 0.0
  %129 = vmatprep.subr.mxu0 0.0
  %130 = vmatpush2.msra.mxu0 0.0
  %131 = vmatprep.subr.mxu0 0.0
  %132 = vmatpush2.msra.mxu0 0.0
  %133 = vmatprep.subr.mxu0 0.0
  %134 = vmatpush2.msra.mxu0 0.0
  %135 = vmatprep.subr.mxu0 0.0
  %136 = vmatpush2.msra.mxu0 0.0
  %137 = vmatprep.subr.mxu0 0.0
  %138 = vmatpush2.msra.mxu0 0.0
  %139 = vmatprep.subr.mxu0 0.0
  %140 = vmatpush2.msra.mxu0 0.0
  %141 = vmatprep.subr.mxu0 0.0
  %142 = vmatpush2.msra.mxu0 0.0
  %143 = vmatprep.subr.mxu0 0.0
  %144 = vmatpush2.msra.mxu0 0.0
  %145 = vmatprep.subr.mxu0 0.0
  %146 = vmatpush2.msra.mxu0 0.0
  %147 = vmatprep.subr.mxu0 0.0
  %148 = vmatpush2.msra.mxu0 0.0
  %149 = vmatprep.subr.mxu0 0.0
  %150 = vmatpush2.msra.mxu0 0.0
  %151 = vmatprep.subr.mxu0 0.0
  %152 = vmatpush2.msra.mxu0 0.0
  %153 = vmatprep.subr.mxu0 0.0
  %154 = vmatpush2.msra.mxu0 0.0
  %155 = vmatprep.subr.mxu0 0.0
  %156 = vmatpush2.msra.mxu0 0.0
  %157 = vmatprep.mubr.f32.mxu0 0.0
  %158 = vmatmul.mubr.f32.gmra.mxu0 %v82
  %v159 = vpop.f32.mrf.mxu0
  %v160 = vadd.f32 %v63, %v159
  %v161 = vpop.f32.mrf.mxu0
  %162 = vmatprep.mubr.f32.mxu0 0.0
  %163 = vmatmul.mubr.f32.gmra.mxu0 %v85
  %v164 = vpop.f32.mrf.mxu0
  %v165 = vadd.f32 %v68, %v164
  %v166 = vpop.f32.mrf.mxu0
  %167 = vmatprep.mubr.f32.mxu0 0.0
  %168 = vmatmul.mubr.f32.gmra.mxu0 %v88
  %v169 = vpop.f32.mrf.mxu0
  %v170 = vadd.f32 %v73, %v169
  %v171 = vpop.f32.mrf.mxu0
  %172 = vmatprep.mubr.f32.mxu0 0.0
  %173 = vmatmul.mubr.f32.gmra.mxu0 %v91
  %v174 = vpop.f32.mrf.mxu0
  %v175 = vadd.f32 %v78, %v174
  %v176 = vpop.f32.mrf.mxu0
  %177 = vdwg.mxu0
  %v178 = vadd.f32 %v160, %v165
  %v179 = vadd.f32 %v178, %v170
  %v180 = vadd.f32 %v179, %v175
  %v181 = vrot.slane %v180, 4
  %v182 = vadd.f32 %v180, %v181
  %v183 = vrot.slane %v182, 2
  %v184 = vadd.f32 %v182, %v183
  %v185 = vrot.slane %v184, 1
  %v186 = vadd.f32 %v184, %v185
  %v187 = vrcp.pop 32.0
  %v188 = vmul.f32 %v186, %v187
  %v189 = vmul.f32 %v160, %v160
  %v190 = vmul.f32 %v165, %v165
  %v191 = vmul.f32 %v170, %v170
  %v192 = vmul.f32 %v175, %v175
  %v193 = vadd.f32 %v189, %v190
  %v194 = vadd.f32 %v193, %v191
  %v195 = vadd.f32 %v194, %v192
  %v196 = vrot.slane %v195, 4
  %v197 = vadd.f32 %v195, %v196
  %v198 = vrot.slane %v197, 2
  %v199 = vadd.f32 %v197, %v198
  %v200 = vrot.slane %v199, 1
  %v201 = vadd.f32 %v199, %v200
  %v202 = vmul.f32 %v201, %v187
  %v203 = vmul.f32 %v188, %v188
  %v204 = vsub.f32 %v202, %v203
  %v205 = vadd.f32 %v204, 1e-05
  %v206 = vrsqrt.pop %v205
  %v207 = vsub.f32 %v160, %v188
  %v208 = vsub.f32 %v165, %v188
  %v209 = vsub.f32 %v170, %v188
  %v210 = vsub.f32 %v175, %v188
  %v211 = vmul.f32 %v207, %v206
  %v212 = vmul.f32 %v208, %v206
  %v213 = vmul.f32 %v209, %v206
  %v214 = vmul.f32 %v210, %v206
  %v215 = vld [vmem:[%s3] sm:$0xff]
  %v216 = vld [vmem:[%s3 + $0x8] sm:$0xff]
  %v217 = vld [vmem:[%s3 + $0x10] sm:$0xff]
  %v218 = vld [vmem:[%s3 + $0x18] sm:$0xff]
  %220 = vset.pattern.permute.xlu0 0
  %221 = vperm.xlu0 %220, %v215
  %v222 = vpop.permute.xlu0 %221
  %225 = vset.pattern.permute.xlu0 0
  %226 = vperm.xlu0 %225, %v216
  %v227 = vpop.permute.xlu0 %226
  %230 = vset.pattern.permute.xlu0 0
  %231 = vperm.xlu0 %230, %v217
  %v232 = vpop.permute.xlu0 %231
  %235 = vset.pattern.permute.xlu0 0
  %236 = vperm.xlu0 %235, %v218
  %v237 = vpop.permute.xlu0 %236
  %v239 = vmul.f32 %v211, %v222
  %v240 = vmul.f32 %v212, %v227
  %v241 = vmul.f32 %v213, %v232
  %v242 = vmul.f32 %v214, %v237
  %v243 = vld [vmem:[%s4] sm:$0xff]
  %v244 = vld [vmem:[%s4 + $0x8] sm:$0xff]
  %v245 = vld [vmem:[%s4 + $0x10] sm:$0xff]
  %v246 = vld [vmem:[%s4 + $0x18] sm:$0xff]
  %248 = vset.pattern.permute.xlu0 0
  %249 = vperm.xlu0 %248, %v243
  %v250 = vpop.permute.xlu0 %249
  %253 = vset.pattern.permute.xlu0 0
  %254 = vperm.xlu0 %253, %v244
  %v255 = vpop.permute.xlu0 %254
  %258 = vset.pattern.permute.xlu0 0
  %259 = vperm.xlu0 %258, %v245
  %v260 = vpop.permute.xlu0 %259
  %263 = vset.pattern.permute.xlu0 0
  %264 = vperm.xlu0 %263, %v246
  %v265 = vpop.permute.xlu0 %264
  %v267 = vadd.f32 %v239, %v250
  %v268 = vadd.f32 %v240, %v255
  %v269 = vadd.f32 %v241, %v260
  %v270 = vadd.f32 %v242, %v265
  %v271 = vmax.f32 %v267, 0.0
  %v272 = vmax.f32 %v268, 0.0
  %v273 = vmax.f32 %v269, 0.0
  %v274 = vmax.f32 %v270, 0.0
  %v275 = vld [vmem:[%s5] sm:$0xff]
  %v276 = vld [vmem:[%s5 + $0x8] sm:$0xff]
  %v277 = vld [vmem:[%s5 + $0x10] sm:$0xff]
  %v278 = vld [vmem:[%s5 + $0x18] sm:$0xff]
  %v279 = vld [vmem:[%s5 + $0x20] sm:$0xff]
  %v280 = vld [vmem:[%s5 + $0x28] sm:$0xff]
  %v281 = vld [vmem:[%s5 + $0x30] sm:$0xff]
  %v282 = vld [vmem:[%s5 + $0x38] sm:$0xff]
  %v283 = vld [vmem:[%s6] sm:$0xff]
  %v284 = vld [vmem:[%s6 + $0x8] sm:$0xff]
  %v285 = vld [vmem:[%s6 + $0x10] sm:$0xff]
  %v286 = vld [vmem:[%s6 + $0x18] sm:$0xff]
  %v287 = vld [vmem:[%s6 + $0x20] sm:$0xff]
  %v288 = vld [vmem:[%s6 + $0x28] sm:$0xff]
  %v289 = vld [vmem:[%s6 + $0x30] sm:$0xff]
  %v290 = vld [vmem:[%s6 + $0x38] sm:$0xff]
  %292 = vset.pattern.permute.xlu0 0
  %293 = vperm.xlu0 %292, %v283
  %v294 = vpop.permute.xlu0 %293
  %297 = vset.pattern.permute.xlu0 0
  %298 = vperm.xlu0 %297, %v284
  %v299 = vpop.permute.xlu0 %298
  %302 = vset.pattern.permute.xlu0 0
  %303 = vperm.xlu0 %302, %v285
  %v304 = vpop.permute.xlu0 %303
  %307 = vset.pattern.permute.xlu0 0
  %308 = vperm.xlu0 %307, %v286
  %v309 = vpop.permute.xlu0 %308
  %312 = vset.pattern.permute.xlu0 0
  %313 = vperm.xlu0 %312, %v287
  %v314 = vpop.permute.xlu0 %313
  %317 = vset.pattern.permute.xlu0 0
  %318 = vperm.xlu0 %317, %v288
  %v319 = vpop.permute.xlu0 %318
  %322 = vset.pattern.permute.xlu0 0
  %323 = vperm.xlu0 %322, %v289
  %v324 = vpop.permute.xlu0 %323
  %327 = vset.pattern.permute.xlu0 0
  %328 = vperm.xlu0 %327, %v290
  %v329 = vpop.permute.xlu0 %328
  %vm331 = vcmask 261120
  %v333 = vsel %vm331, %v275, 0
  %v336 = vsel %vm331, %v276, 0
  %v339 = vsel %vm331, %v277, 0
  %v342 = vsel %vm331, %v278, 0
  %v345 = vsel %vm331, %v279, 0
  %v348 = vsel %vm331, %v280, 0
  %v351 = vsel %vm331, %v281, 0
  %v354 = vsel %vm331, %v282, 0
  %356 = vmatprep.subr.mxu0 0.0
  %357 = vmatpush1.msra.mxu0 0.0
  %358 = vmatprep.subr.mxu0 0.0
  %359 = vmatpush1.msra.mxu0 0.0
  %360 = vmatprep.subr.mxu0 0.0
  %361 = vmatpush1.msra.mxu0 0.0
  %362 = vmatprep.subr.mxu0 0.0
  %363 = vmatpush1.msra.mxu0 0.0
  %364 = vmatprep.subr.mxu0 0.0
  %365 = vmatpush1.msra.mxu0 0.0
  %366 = vmatprep.subr.mxu0 0.0
  %367 = vmatpush1.msra.mxu0 0.0
  %368 = vmatprep.subr.mxu0 0.0
  %369 = vmatpush1.msra.mxu0 0.0
  %370 = vmatprep.subr.mxu0 0.0
  %371 = vmatpush1.msra.mxu0 0.0
  %372 = vmatprep.subr.mxu0 0.0
  %373 = vmatpush1.msra.mxu0 0.0
  %374 = vmatprep.subr.mxu0 0.0
  %375 = vmatpush1.msra.mxu0 0.0
  %376 = vmatprep.subr.mxu0 0.0
  %377 = vmatpush1.msra.mxu0 0.0
  %378 = vmatprep.subr.mxu0 0.0
  %379 = vmatpush1.msra.mxu0 0.0
  %380 = vmatprep.subr.mxu0 0.0
  %381 = vmatpush1.msra.mxu0 %v274
  %382 = vmatprep.subr.mxu0 0.0
  %383 = vmatpush1.msra.mxu0 %v273
  %384 = vmatprep.subr.mxu0 0.0
  %385 = vmatpush1.msra.mxu0 %v272
  %386 = vmatprep.subr.mxu0 0.0
  %387 = vmatpush1.msra.mxu0 %v271
  %388 = vmatprep.subr.mxu0 0.0
  %389 = vmatpush2.msra.mxu0 0.0
  %390 = vmatprep.subr.mxu0 0.0
  %391 = vmatpush2.msra.mxu0 0.0
  %392 = vmatprep.subr.mxu0 0.0
  %393 = vmatpush2.msra.mxu0 0.0
  %394 = vmatprep.subr.mxu0 0.0
  %395 = vmatpush2.msra.mxu0 0.0
  %396 = vmatprep.subr.mxu0 0.0
  %397 = vmatpush2.msra.mxu0 0.0
  %398 = vmatprep.subr.mxu0 0.0
  %399 = vmatpush2.msra.mxu0 0.0
  %400 = vmatprep.subr.mxu0 0.0
  %401 = vmatpush2.msra.mxu0 0.0
  %402 = vmatprep.subr.mxu0 0.0
  %403 = vmatpush2.msra.mxu0 0.0
  %404 = vmatprep.subr.mxu0 0.0
  %405 = vmatpush2.msra.mxu0 0.0
  %406 = vmatprep.subr.mxu0 0.0
  %407 = vmatpush2.msra.mxu0 0.0
  %408 = vmatprep.subr.mxu0 0.0
  %409 = vmatpush2.msra.mxu0 0.0
  %410 = vmatprep.subr.mxu0 0.0
  %411 = vmatpush2.msra.mxu0 0.0
  %412 = vmatprep.subr.mxu0 0.0
  %413 = vmatpush2.msra.mxu0 0.0
  %414 = vmatprep.subr.mxu0 0.0
  %415 = vmatpush2.msra.mxu0 0.0
  %416 = vmatprep.subr.mxu0 0.0
  %417 = vmatpush2.msra.mxu0 0.0
  %418 = vmatprep.subr.mxu0 0.0
  %419 = vmatpush2.msra.mxu0 0.0
  %420 = vmatprep.mubr.f32.mxu0 0.0
  %421 = vmatmul.mubr.f32.gmra.mxu0 %v333
  %v422 = vpop.f32.mrf.mxu0
  %v423 = vadd.f32 %v294, %v422
  %v424 = vpop.f32.mrf.mxu0
  %425 = vmatprep.mubr.f32.mxu0 0.0
  %426 = vmatmul.mubr.f32.gmra.mxu0 %v336
  %v427 = vpop.f32.mrf.mxu0
  %v428 = vadd.f32 %v299, %v427
  %v429 = vpop.f32.mrf.mxu0
  %430 = vmatprep.mubr.f32.mxu0 0.0
  %431 = vmatmul.mubr.f32.gmra.mxu0 %v339
  %v432 = vpop.f32.mrf.mxu0
  %v433 = vadd.f32 %v304, %v432
  %v434 = vpop.f32.mrf.mxu0
  %435 = vmatprep.mubr.f32.mxu0 0.0
  %436 = vmatmul.mubr.f32.gmra.mxu0 %v342
  %v437 = vpop.f32.mrf.mxu0
  %v438 = vadd.f32 %v309, %v437
  %v439 = vpop.f32.mrf.mxu0
  %440 = vmatprep.mubr.f32.mxu0 0.0
  %441 = vmatmul.mubr.f32.gmra.mxu0 %v345
  %v442 = vpop.f32.mrf.mxu0
  %v443 = vadd.f32 %v314, %v442
  %v444 = vpop.f32.mrf.mxu0
  %445 = vmatprep.mubr.f32.mxu0 0.0
  %446 = vmatmul.mubr.f32.gmra.mxu0 %v348
  %v447 = vpop.f32.mrf.mxu0
  %v448 = vadd.f32 %v319, %v447
  %v449 = vpop.f32.mrf.mxu0
  %450 = vmatprep.mubr.f32.mxu0 0.0
  %451 = vmatmul.mubr.f32.gmra.mxu0 %v351
  %v452 = vpop.f32.mrf.mxu0
  %v453 = vadd.f32 %v324, %v452
  %v454 = vpop.f32.mrf.mxu0
  %455 = vmatprep.mubr.f32.mxu0 0.0
  %456 = vmatmul.mubr.f32.gmra.mxu0 %v354
  %v457 = vpop.f32.mrf.mxu0
  %v458 = vadd.f32 %v329, %v457
  %v459 = vpop.f32.mrf.mxu0
  %460 = vdwg.mxu0
  %v461 = vadd.f32 %v423, %v428
  %v462 = vadd.f32 %v461, %v433
  %v463 = vadd.f32 %v462, %v438
  %v464 = vadd.f32 %v463, %v443
  %v465 = vadd.f32 %v464, %v448
  %v466 = vadd.f32 %v465, %v453
  %v467 = vadd.f32 %v466, %v458
  %v468 = vrot.slane %v467, 4
  %v469 = vadd.f32 %v467, %v468
  %v470 = vrot.slane %v469, 2
  %v471 = vadd.f32 %v469, %v470
  %v472 = vrot.slane %v471, 1
  %v473 = vadd.f32 %v471, %v472
  %v474 = vrcp.pop 64.0
  %v475 = vmul.f32 %v473, %v474
  %v476 = vmul.f32 %v423, %v423
  %v477 = vmul.f32 %v428, %v428
  %v478 = vmul.f32 %v433, %v433
  %v479 = vmul.f32 %v438, %v438
  %v480 = vmul.f32 %v443, %v443
  %v481 = vmul.f32 %v448, %v448
  %v482 = vmul.f32 %v453, %v453
  %v483 = vmul.f32 %v458, %v458
  %v484 = vadd.f32 %v476, %v477
  %v485 = vadd.f32 %v484, %v478
  %v486 = vadd.f32 %v485, %v479
  %v487 = vadd.f32 %v486, %v480
  %v488 = vadd.f32 %v487, %v481
  %v489 = vadd.f32 %v488, %v482
  %v490 = vadd.f32 %v489, %v483
  %v491 = vrot.slane %v490, 4
  %v492 = vadd.f32 %v490, %v491
  %v493 = vrot.slane %v492, 2
  %v494 = vadd.f32 %v492, %v493
  %v495 = vrot.slane %v494, 1
  %v496 = vadd.f32 %v494, %v495
  %v497 = vmul.f32 %v496, %v474
  %v498 = vmul.f32 %v475, %v475
  %v499 = vsub.f32 %v497, %v498
  %v500 = vadd.f32 %v499, 1e-05
  %v501 = vrsqrt.pop %v500
  %v502 = vsub.f32 %v423, %v475
  %v503 = vsub.f32 %v428, %v475
  %v504 = vsub.f32 %v433, %v475
  %v505 = vsub.f32 %v438, %v475
  %v506 = vsub.f32 %v443, %v475
  %v507 = vsub.f32 %v448, %v475
  %v508 = vsub.f32 %v453, %v475
  %v509 = vsub.f32 %v458, %v475
  %v510 = vmul.f32 %v502, %v501
  %v511 = vmul.f32 %v503, %v501
  %v512 = vmul.f32 %v504, %v501
  %v513 = vmul.f32 %v505, %v501
  %v514 = vmul.f32 %v506, %v501
  %v515 = vmul.f32 %v507, %v501
  %v516 = vmul.f32 %v508, %v501
  %v517 = vmul.f32 %v509, %v501
  %v518 = vld [vmem:[%s7] sm:$0xff]
  %v519 = vld [vmem:[%s7 + $0x8] sm:$0xff]
  %v520 = vld [vmem:[%s7 + $0x10] sm:$0xff]
  %v521 = vld [vmem:[%s7 + $0x18] sm:$0xff]
  %v522 = vld [vmem:[%s7 + $0x20] sm:$0xff]
  %v523 = vld [vmem:[%s7 + $0x28] sm:$0xff]
  %v524 = vld [vmem:[%s7 + $0x30] sm:$0xff]
  %v525 = vld [vmem:[%s7 + $0x38] sm:$0xff]
  %527 = vset.pattern.permute.xlu0 0
  %528 = vperm.xlu0 %527, %v518
  %v529 = vpop.permute.xlu0 %528
  %532 = vset.pattern.permute.xlu0 0
  %533 = vperm.xlu0 %532, %v519
  %v534 = vpop.permute.xlu0 %533
  %537 = vset.pattern.permute.xlu0 0
  %538 = vperm.xlu0 %537, %v520
  %v539 = vpop.permute.xlu0 %538
  %542 = vset.pattern.permute.xlu0 0
  %543 = vperm.xlu0 %542, %v521
  %v544 = vpop.permute.xlu0 %543
  %547 = vset.pattern.permute.xlu0 0
  %548 = vperm.xlu0 %547, %v522
  %v549 = vpop.permute.xlu0 %548
  %552 = vset.pattern.permute.xlu0 0
  %553 = vperm.xlu0 %552, %v523
  %v554 = vpop.permute.xlu0 %553
  %557 = vset.pattern.permute.xlu0 0
  %558 = vperm.xlu0 %557, %v524
  %v559 = vpop.permute.xlu0 %558
  %562 = vset.pattern.permute.xlu0 0
  %563 = vperm.xlu0 %562, %v525
  %v564 = vpop.permute.xlu0 %563
  %v566 = vmul.f32 %v510, %v529
  %v567 = vmul.f32 %v511, %v534
  %v568 = vmul.f32 %v512, %v539
  %v569 = vmul.f32 %v513, %v544
  %v570 = vmul.f32 %v514, %v549
  %v571 = vmul.f32 %v515, %v554
  %v572 = vmul.f32 %v516, %v559
  %v573 = vmul.f32 %v517, %v564
  %v574 = vld [vmem:[%s8] sm:$0xff]
  %v575 = vld [vmem:[%s8 + $0x8] sm:$0xff]
  %v576 = vld [vmem:[%s8 + $0x10] sm:$0xff]
  %v577 = vld [vmem:[%s8 + $0x18] sm:$0xff]
  %v578 = vld [vmem:[%s8 + $0x20] sm:$0xff]
  %v579 = vld [vmem:[%s8 + $0x28] sm:$0xff]
  %v580 = vld [vmem:[%s8 + $0x30] sm:$0xff]
  %v581 = vld [vmem:[%s8 + $0x38] sm:$0xff]
  %583 = vset.pattern.permute.xlu0 0
  %584 = vperm.xlu0 %583, %v574
  %v585 = vpop.permute.xlu0 %584
  %588 = vset.pattern.permute.xlu0 0
  %589 = vperm.xlu0 %588, %v575
  %v590 = vpop.permute.xlu0 %589
  %593 = vset.pattern.permute.xlu0 0
  %594 = vperm.xlu0 %593, %v576
  %v595 = vpop.permute.xlu0 %594
  %598 = vset.pattern.permute.xlu0 0
  %599 = vperm.xlu0 %598, %v577
  %v600 = vpop.permute.xlu0 %599
  %603 = vset.pattern.permute.xlu0 0
  %604 = vperm.xlu0 %603, %v578
  %v605 = vpop.permute.xlu0 %604
  %608 = vset.pattern.permute.xlu0 0
  %609 = vperm.xlu0 %608, %v579
  %v610 = vpop.permute.xlu0 %609
  %613 = vset.pattern.permute.xlu0 0
  %614 = vperm.xlu0 %613, %v580
  %v615 = vpop.permute.xlu0 %614
  %618 = vset.pattern.permute.xlu0 0
  %619 = vperm.xlu0 %618, %v581
  %v620 = vpop.permute.xlu0 %619
  %v622 = vadd.f32 %v566, %v585
  %v623 = vadd.f32 %v567, %v590
  %v624 = vadd.f32 %v568, %v595
  %v625 = vadd.f32 %v569, %v600
  %v626 = vadd.f32 %v570, %v605
  %v627 = vadd.f32 %v571, %v610
  %v628 = vadd.f32 %v572, %v615
  %v629 = vadd.f32 %v573, %v620
  %v630 = vmax.f32 %v622, 0.0
  %v631 = vmax.f32 %v623, 0.0
  %v632 = vmax.f32 %v624, 0.0
  %v633 = vmax.f32 %v625, 0.0
  %v634 = vmax.f32 %v626, 0.0
  %v635 = vmax.f32 %v627, 0.0
  %v636 = vmax.f32 %v628, 0.0
  %v637 = vmax.f32 %v629, 0.0
  %v638 = vld [vmem:[%s9] sm:$0xff]
  %v639 = vld [vmem:[%s9 + $0x8] sm:$0xff]
  %v640 = vld [vmem:[%s9 + $0x10] sm:$0xff]
  %v641 = vld [vmem:[%s9 + $0x18] sm:$0xff]
  %v642 = vld [vmem:[%s10] sm:$0xff]
  %v643 = vld [vmem:[%s10 + $0x8] sm:$0xff]
  %v644 = vld [vmem:[%s10 + $0x10] sm:$0xff]
  %v645 = vld [vmem:[%s10 + $0x18] sm:$0xff]
  %647 = vset.pattern.permute.xlu0 0
  %648 = vperm.xlu0 %647, %v642
  %v649 = vpop.permute.xlu0 %648
  %652 = vset.pattern.permute.xlu0 0
  %653 = vperm.xlu0 %652, %v643
  %v654 = vpop.permute.xlu0 %653
  %657 = vset.pattern.permute.xlu0 0
  %658 = vperm.xlu0 %657, %v644
  %v659 = vpop.permute.xlu0 %658
  %662 = vset.pattern.permute.xlu0 0
  %663 = vperm.xlu0 %662, %v645
  %v664 = vpop.permute.xlu0 %663
  %vm666 = vcmask 523264
  %v668 = vsel %vm666, %v638, 0
  %v671 = vsel %vm666, %v639, 0
  %v674 = vsel %vm666, %v640, 0
  %v677 = vsel %vm666, %v641, 0
  %679 = vmatprep.subr.mxu0 0.0
  %680 = vmatpush1.msra.mxu0 0.0
  %681 = vmatprep.subr.mxu0 0.0
  %682 = vmatpush1.msra.mxu0 0.0
  %683 = vmatprep.subr.mxu0 0.0
  %684 = vmatpush1.msra.mxu0 0.0
  %685 = vmatprep.subr.mxu0 0.0
  %686 = vmatpush1.msra.mxu0 0.0
  %687 = vmatprep.subr.mxu0 0.0
  %688 = vmatpush1.msra.mxu0 0.0
  %689 = vmatprep.subr.mxu0 0.0
  %690 = vmatpush1.msra.mxu0 0.0
  %691 = vmatprep.subr.mxu0 0.0
  %692 = vmatpush1.msra.mxu0 0.0
  %693 = vmatprep.subr.mxu0 0.0
  %694 = vmatpush1.msra.mxu0 0.0
  %695 = vmatprep.subr.mxu0 0.0
  %696 = vmatpush1.msra.mxu0 %v637
  %697 = vmatprep.subr.mxu0 0.0
  %698 = vmatpush1.msra.mxu0 %v636
  %699 = vmatprep.subr.mxu0 0.0
  %700 = vmatpush1.msra.mxu0 %v635
  %701 = vmatprep.subr.mxu0 0.0
  %702 = vmatpush1.msra.mxu0 %v634
  %703 = vmatprep.subr.mxu0 0.0
  %704 = vmatpush1.msra.mxu0 %v633
  %705 = vmatprep.subr.mxu0 0.0
  %706 = vmatpush1.msra.mxu0 %v632
  %707 = vmatprep.subr.mxu0 0.0
  %708 = vmatpush1.msra.mxu0 %v631
  %709 = vmatprep.subr.mxu0 0.0
  %710 = vmatpush1.msra.mxu0 %v630
  %711 = vmatprep.subr.mxu0 0.0
  %712 = vmatpush2.msra.mxu0 0.0
  %713 = vmatprep.subr.mxu0 0.0
  %714 = vmatpush2.msra.mxu0 0.0
  %715 = vmatprep.subr.mxu0 0.0
  %716 = vmatpush2.msra.mxu0 0.0
  %717 = vmatprep.subr.mxu0 0.0
  %718 = vmatpush2.msra.mxu0 0.0
  %719 = vmatprep.subr.mxu0 0.0
  %720 = vmatpush2.msra.mxu0 0.0
  %721 = vmatprep.subr.mxu0 0.0
  %722 = vmatpush2.msra.mxu0 0.0
  %723 = vmatprep.subr.mxu0 0.0
  %724 = vmatpush2.msra.mxu0 0.0
  %725 = vmatprep.subr.mxu0 0.0
  %726 = vmatpush2.msra.mxu0 0.0
  %727 = vmatprep.subr.mxu0 0.0
  %728 = vmatpush2.msra.mxu0 0.0
  %729 = vmatprep.subr.mxu0 0.0
  %730 = vmatpush2.msra.mxu0 0.0
  %731 = vmatprep.subr.mxu0 0.0
  %732 = vmatpush2.msra.mxu0 0.0
  %733 = vmatprep.subr.mxu0 0.0
  %734 = vmatpush2.msra.mxu0 0.0
  %735 = vmatprep.subr.mxu0 0.0
  %736 = vmatpush2.msra.mxu0 0.0
  %737 = vmatprep.subr.mxu0 0.0
  %738 = vmatpush2.msra.mxu0 0.0
  %739 = vmatprep.subr.mxu0 0.0
  %740 = vmatpush2.msra.mxu0 0.0
  %741 = vmatprep.subr.mxu0 0.0
  %742 = vmatpush2.msra.mxu0 0.0
  %743 = vmatprep.mubr.f32.mxu0 0.0
  %744 = vmatmul.mubr.f32.gmra.mxu0 %v668
  %v745 = vpop.f32.mrf.mxu0
  %v746 = vadd.f32 %v649, %v745
  %v747 = vpop.f32.mrf.mxu0
  %748 = vmatprep.mubr.f32.mxu0 0.0
  %749 = vmatmul.mubr.f32.gmra.mxu0 %v671
  %v750 = vpop.f32.mrf.mxu0
  %v751 = vadd.f32 %v654, %v750
  %v752 = vpop.f32.mrf.mxu0
  %753 = vmatprep.mubr.f32.mxu0 0.0
  %754 = vmatmul.mubr.f32.gmra.mxu0 %v674
  %v755 = vpop.f32.mrf.mxu0
  %v756 = vadd.f32 %v659, %v755
  %v757 = vpop.f32.mrf.mxu0
  %758 = vmatprep.mubr.f32.mxu0 0.0
  %759 = vmatmul.mubr.f32.gmra.mxu0 %v677
  %v760 = vpop.f32.mrf.mxu0
  %v761 = vadd.f32 %v664, %v760
  %v762 = vpop.f32.mrf.mxu0
  %763 = vdwg.mxu0
  %v764 = vadd.f32 %v746, %v751
  %v765 = vadd.f32 %v764, %v756
  %v766 = vadd.f32 %v765, %v761
  %v767 = vrot.slane %v766, 4
  %v768 = vadd.f32 %v766, %v767
  %v769 = vrot.slane %v768, 2
  %v770 = vadd.f32 %v768, %v769
  %v771 = vrot.slane %v770, 1
  %v772 = vadd.f32 %v770, %v771
  %v773 = vmul.f32 %v772, %v187
  %v774 = vmul.f32 %v746, %v746
  %v775 = vmul.f32 %v751, %v751
  %v776 = vmul.f32 %v756, %v756
  %v777 = vmul.f32 %v761, %v761
  %v778 = vadd.f32 %v774, %v775
  %v779 = vadd.f32 %v778, %v776
  %v780 = vadd.f32 %v779, %v777
  %v781 = vrot.slane %v780, 4
  %v782 = vadd.f32 %v780, %v781
  %v783 = vrot.slane %v782, 2
  %v784 = vadd.f32 %v782, %v783
  %v785 = vrot.slane %v784, 1
  %v786 = vadd.f32 %v784, %v785
  %v787 = vmul.f32 %v786, %v187
  %v788 = vmul.f32 %v773, %v773
  %v789 = vsub.f32 %v787, %v788
  %v790 = vadd.f32 %v789, 1e-05
  %v791 = vrsqrt.pop %v790
  %v792 = vsub.f32 %v746, %v773
  %v793 = vsub.f32 %v751, %v773
  %v794 = vsub.f32 %v756, %v773
  %v795 = vsub.f32 %v761, %v773
  %v796 = vmul.f32 %v792, %v791
  %v797 = vmul.f32 %v793, %v791
  %v798 = vmul.f32 %v794, %v791
  %v799 = vmul.f32 %v795, %v791
  %v800 = vld [vmem:[%s11] sm:$0xff]
  %v801 = vld [vmem:[%s11 + $0x8] sm:$0xff]
  %v802 = vld [vmem:[%s11 + $0x10] sm:$0xff]
  %v803 = vld [vmem:[%s11 + $0x18] sm:$0xff]
  %805 = vset.pattern.permute.xlu0 0
  %806 = vperm.xlu0 %805, %v800
  %v807 = vpop.permute.xlu0 %806
  %810 = vset.pattern.permute.xlu0 0
  %811 = vperm.xlu0 %810, %v801
  %v812 = vpop.permute.xlu0 %811
  %815 = vset.pattern.permute.xlu0 0
  %816 = vperm.xlu0 %815, %v802
  %v817 = vpop.permute.xlu0 %816
  %820 = vset.pattern.permute.xlu0 0
  %821 = vperm.xlu0 %820, %v803
  %v822 = vpop.permute.xlu0 %821
  %v824 = vmul.f32 %v796, %v807
  %v825 = vmul.f32 %v797, %v812
  %v826 = vmul.f32 %v798, %v817
  %v827 = vmul.f32 %v799, %v822
  %v828 = vld [vmem:[%s12] sm:$0xff]
  %v829 = vld [vmem:[%s12 + $0x8] sm:$0xff]
  %v830 = vld [vmem:[%s12 + $0x10] sm:$0xff]
  %v831 = vld [vmem:[%s12 + $0x18] sm:$0xff]
  %833 = vset.pattern.permute.xlu0 0
  %834 = vperm.xlu0 %833, %v828
  %v835 = vpop.permute.xlu0 %834
  %838 = vset.pattern.permute.xlu0 0
  %839 = vperm.xlu0 %838, %v829
  %v840 = vpop.permute.xlu0 %839
  %843 = vset.pattern.permute.xlu0 0
  %844 = vperm.xlu0 %843, %v830
  %v845 = vpop.permute.xlu0 %844
  %848 = vset.pattern.permute.xlu0 0
  %849 = vperm.xlu0 %848, %v831
  %v850 = vpop.permute.xlu0 %849
  %v852 = vadd.f32 %v824, %v835
  %v853 = vadd.f32 %v825, %v840
  %v854 = vadd.f32 %v826, %v845
  %v855 = vadd.f32 %v827, %v850
  %v856 = vmax.f32 %v852, 0.0
  %v857 = vmax.f32 %v853, 0.0
  %v858 = vmax.f32 %v854, 0.0
  %v859 = vmax.f32 %v855, 0.0
  %v860 = vld [vmem:[%s13] sm:$0xff]
  %v861 = vld [vmem:[%s14] sm:$0xff]
  %863 = vset.pattern.permute.xlu0 0
  %864 = vperm.xlu0 %863, %v861
  %v865 = vpop.permute.xlu0 %864
  %v868 = vsel %vm331, %v860, 0
  %870 = vmatprep.subr.mxu0 0.0
  %871 = vmatpush1.msra.mxu0 0.0
  %872 = vmatprep.subr.mxu0 0.0
  %873 = vmatpush1.msra.mxu0 0.0
  %874 = vmatprep.subr.mxu0 0.0
  %875 = vmatpush1.msra.mxu0 0.0
  %876 = vmatprep.subr.mxu0 0.0
  %877 = vmatpush1.msra.mxu0 0.0
  %878 = vmatprep.subr.mxu0 0.0
  %879 = vmatpush1.msra.mxu0 0.0
  %880 = vmatprep.subr.mxu0 0.0
  %881 = vmatpush1.msra.mxu0 0.0
  %882 = vmatprep.subr.mxu0 0.0
  %883 = vmatpush1.msra.mxu0 0.0
  %884 = vmatprep.subr.mxu0 0.0
  %885 = vmatpush1.msra.mxu0 0.0
  %886 = vmatprep.subr.mxu0 0.0
  %887 = vmatpush1.msra.mxu0 0.0
  %888 = vmatprep.subr.mxu0 0.0
  %889 = vmatpush1.msra.mxu0 0.0
  %890 = vmatprep.subr.mxu0 0.0
  %891 = vmatpush1.msra.mxu0 0.0
  %892 = vmatprep.subr.mxu0 0.0
  %893 = vmatpush1.msra.mxu0 0.0
  %894 = vmatprep.subr.mxu0 0.0
  %895 = vmatpush1.msra.mxu0 %v859
  %896 = vmatprep.subr.mxu0 0.0
  %897 = vmatpush1.msra.mxu0 %v858
  %898 = vmatprep.subr.mxu0 0.0
  %899 = vmatpush1.msra.mxu0 %v857
  %900 = vmatprep.subr.mxu0 0.0
  %901 = vmatpush1.msra.mxu0 %v856
  %902 = vmatprep.subr.mxu0 0.0
  %903 = vmatpush2.msra.mxu0 0.0
  %904 = vmatprep.subr.mxu0 0.0
  %905 = vmatpush2.msra.mxu0 0.0
  %906 = vmatprep.subr.mxu0 0.0
  %907 = vmatpush2.msra.mxu0 0.0
  %908 = vmatprep.subr.mxu0 0.0
  %909 = vmatpush2.msra.mxu0 0.0
  %910 = vmatprep.subr.mxu0 0.0
  %911 = vmatpush2.msra.mxu0 0.0
  %912 = vmatprep.subr.mxu0 0.0
  %913 = vmatpush2.msra.mxu0 0.0
  %914 = vmatprep.subr.mxu0 0.0
  %915 = vmatpush2.msra.mxu0 0.0
  %916 = vmatprep.subr.mxu0 0.0
  %917 = vmatpush2.msra.mxu0 0.0
  %918 = vmatprep.subr.mxu0 0.0
  %919 = vmatpush2.msra.mxu0 0.0
  %920 = vmatprep.subr.mxu0 0.0
  %921 = vmatpush2.msra.mxu0 0.0
  %922 = vmatprep.subr.mxu0 0.0
  %923 = vmatpush2.msra.mxu0 0.0
  %924 = vmatprep.subr.mxu0 0.0
  %925 = vmatpush2.msra.mxu0 0.0
  %926 = vmatprep.subr.mxu0 0.0
  %927 = vmatpush2.msra.mxu0 0.0
  %928 = vmatprep.subr.mxu0 0.0
  %929 = vmatpush2.msra.mxu0 0.0
  %930 = vmatprep.subr.mxu0 0.0
  %931 = vmatpush2.msra.mxu0 0.0
  %932 = vmatprep.subr.mxu0 0.0
  %933 = vmatpush2.msra.mxu0 0.0
  %934 = vmatprep.mubr.f32.mxu0 0.0
  %935 = vmatmul.mubr.f32.gmra.mxu0 %v868
  %v936 = vpop.f32.mrf.mxu0
  %v937 = vadd.f32 %v865, %v936
  %v938 = vpop.f32.mrf.mxu0
  %939 = vdwg.mxu0
  %v940 = vtanh.pop %v937
  %941 = vst [vmem:[%s15] sm:$0xff] %v940
  // Predicated region
  $region62: #{actor_forward.1} parent=0 // pred_check
    _
  $region63: #{actor_forward.1} parent=0 // pred_check_branch
    %943 = sbr.rel (0) target = $region65
  $region64: #{actor_forward.1} parent=0 // pred_region
    _
  $region65: #{actor_forward.1} parent=0 // pred_fallthru
    _
  // Predicated region
  $region66: #{actor_forward.1} parent=0 // pred_check
    _
  $region67: #{actor_forward.1} parent=0 // pred_check_branch
    %945 = sbr.rel (0) target = $region69
  $region68: #{actor_forward.1} parent=0 // pred_region
    _
  $region69: #{actor_forward.1} parent=0 // pred_fallthru
    _

</llo_original>
